<compile_context>
chip_gen: v7x
topology: tpu7x:2x2x1
jax: 0.10.0
libtpu: 0.0.40
codegen_flags: <defaults>
</compile_context>

<pallas_src>
import functools

import jax
import jax.numpy as jnp
from jax import lax
from jax.experimental import pallas as pl
from jax.experimental.pallas import tpu as pltpu


def _attention_kernel(x_ref, c_ref, wq_ref, wk_ref, wv_ref, wo_ref, bo_ref,
                      o_ref, out_scratch, *, block_batch, n, m, heads, dim_head):
    """`block_batch` batches per grid step; all heads fused into the projections.

    x_ref      : (Bb, N, Dq)    query tokens (input dtype)
    c_ref      : (Bb, M, Dc)    context tokens (input dtype)
    wq_ref     : (Dq, H*Dh)     fused query projection, softmax scale folded (bf16)
    wk_ref     : (Dc, H*Dh)     fused key projection (bf16)
    wv_ref     : (Dc, H*Dh)     fused value projection (bf16)
    wo_ref     : (H*Dh, Dq)     output projection (bf16)
    bo_ref     : (1, Dq)        output projection bias (f32)
    o_ref      : (Bb, N, Dq)    output
    out_scratch: (Bb*N, H*Dh)   f32 VMEM scratch for normalized head outputs
    """
    inner = heads * dim_head

    # Flattened row slabs: one big matmul per projection (fills MXU sublanes
    # across the merged batches). The casts are no-ops if inputs are already
    # bf16 upstream.
    xb = x_ref[...].reshape(block_batch * n, -1).astype(jnp.bfloat16)    # (Bb*N, Dq)
    cb = c_ref[...].reshape(block_batch * m, -1).astype(jnp.bfloat16)    # (Bb*M, Dc)

    q = jnp.dot(xb, wq_ref[...], preferred_element_type=jnp.float32)     # (Bb*N, inner)
    k = jnp.dot(cb, wk_ref[...], preferred_element_type=jnp.float32)     # (Bb*M, inner)
    v = jnp.dot(cb, wv_ref[...], preferred_element_type=jnp.float32)     # (Bb*M, inner)

    # Cast once for the MXU consumers; softmax math below stays in f32.
    qb = q.astype(jnp.bfloat16)
    kb = k.astype(jnp.bfloat16)
    vb = v.astype(jnp.bfloat16)

    dn = (((1,), (1,)), ((), ()))   # contract last dims, no batch dims (no k.T)

    # Per-(batch, head) softmax attention. Static unrolled loops (Bb*H is small
    # here); each normalized head result goes straight into VMEM scratch so the
    # per-iteration live set stays bounded (no list + concat).
    for b in range(block_batch):
        qrows = slice(b * n, (b + 1) * n)
        krows = slice(b * m, (b + 1) * m)
        for h in range(heads):
            cols = slice(h * dim_head, (h + 1) * dim_head)
            qh = qb[qrows, cols]                                          # (N, Dh)
            kh = kb[krows, cols]                                          # (M, Dh)
            vh = vb[krows, cols]                                          # (M, Dh)

            sim = lax.dot_general(qh, kh, dimension_numbers=dn,
                                  preferred_element_type=jnp.float32)     # (N, M)
            sim = sim - jnp.max(sim, axis=-1, keepdims=True)
            p = jnp.exp(sim)                                              # f32
            denom = jnp.sum(p, axis=-1, keepdims=True)                    # (N, 1)

            oh = jnp.dot(p.astype(jnp.bfloat16), vh,
                         preferred_element_type=jnp.float32)              # (N, Dh)
            # Deferred softmax normalization: one O(N*Dh) scale.
            out_scratch[qrows, cols] = oh * pl.reciprocal(denom, approx=False)

    # Single fused output projection + bias over all Bb*N rows.
    out = jnp.dot(out_scratch[...].astype(jnp.bfloat16), wo_ref[...],
                  preferred_element_type=jnp.float32)                     # (Bb*N, Dq)
    out = out + bo_ref[...]
    o_ref[...] = out.reshape(o_ref.shape).astype(o_ref.dtype)
    # TODO(synk): mask path not implemented (forward is exercised with
    #             mask=None); dropout(p=0.0) is the identity in eval mode.
    # TODO(synk): for long contexts, tile the M axis with an online-softmax
    #             (flash-style) loop instead of materializing the full (N, M)
    #             score matrix (cut over earlier on v7x's 64 MiB/TC VMEM).


def _choose_block_batch(B, N, M, Dq, Dc, inner):
    """Pick batches-per-step: target ~256 merged rows per projection matmul,
    stay well inside the VMEM budget, keep the grid length >= 2 when possible
    (both v7x TensorCores get work), and divide B evenly."""
    target_rows = 256
    bb = max(1, -(-target_rows // max(N, M)))          # ceil(target / rows-per-batch)

    budget = 24 * 1024 * 1024                          # per-step f32 working-set cap

    def step_bytes(b):
        rows_q, rows_kv = b * N, b * M
        # input blocks + q/k/v (f32 + bf16 copies) + scratch + output block
        return 4 * (rows_q * Dq + rows_kv * Dc
                    + 2 * rows_q * inner + 4 * rows_kv * inner
                    + rows_q * inner + rows_q * Dq)

    while bb > 1 and step_bytes(bb) > budget:
        bb -= 1
    bb = min(bb, B)
    if B >= 2:
        bb = min(bb, B // 2)                           # keep grid length >= 2
    bb = max(bb, 1)
    while B % bb != 0:                                 # make bb a divisor of B
        bb -= 1
    return bb


def attention_pallas(x, context, w_q, w_kv, w_o, b_o, *, heads, dim_head, scale):
    """Forward of the LBANP Attention module (mask=None, dropout=0).

    x       : (B, N, Dq)  f32 or bf16
    context : (B, M, Dc)  f32 or bf16, or None (defaults to x)
    w_q     : (H*Dh, Dq)        PyTorch nn.Linear weight layout (out, in)
    w_kv    : (2*H*Dh, Dc)
    w_o     : (Dq, H*Dh)
    b_o     : (Dq,)
    """
    if context is None:
        context = x
    B, N, Dq = x.shape
    _, M, Dc = context.shape
    inner = heads * dim_head

    # Setup-time weight prep: transpose to (in, out), fold the softmax scale
    # into the query projection, cast MXU weights to bf16 (f32 accumulation).
    wq = (w_q.T * scale).astype(jnp.bfloat16)        # (Dq, inner)
    wk = w_kv[:inner].T.astype(jnp.bfloat16)         # (Dc, inner)
    wv = w_kv[inner:].T.astype(jnp.bfloat16)         # (Dc, inner)
    wo = w_o.T.astype(jnp.bfloat16)                  # (inner, Dq)
    bo = b_o.reshape(1, Dq).astype(jnp.float32)

    bb = _choose_block_batch(B, N, M, Dq, Dc, inner)
    grid = (B // bb,)

    flops = 2 * B * (N * Dq * inner + 2 * M * Dc * inner
                     + 2 * heads * N * M * dim_head + N * inner * Dq)
    transcendentals = B * heads * N * M
    bytes_accessed = (4 * B * N * Dq + 4 * B * M * Dc            # activations in
                      + 2 * (Dq * inner + 2 * Dc * inner + inner * Dq)  # bf16 weights
                      + 4 * Dq                                   # bias
                      + 4 * B * N * Dq)                          # output
    cost = pl.CostEstimate(flops=int(flops),
                           transcendentals=int(transcendentals),
                           bytes_accessed=int(bytes_accessed))

    kernel = functools.partial(_attention_kernel, block_batch=bb, n=N, m=M,
                               heads=heads, dim_head=dim_head)
    return pl.pallas_call(
        kernel,
        out_shape=jax.ShapeDtypeStruct((B, N, Dq), x.dtype),
        grid=grid,
        in_specs=[
            pl.BlockSpec((bb, N, Dq), lambda b: (b, 0, 0)),
            pl.BlockSpec((bb, M, Dc), lambda b: (b, 0, 0)),
            # Weights: full-array blocks with constant index_maps so they are
            # DMA'd once and stay resident in VMEM across grid steps.
            pl.BlockSpec((Dq, inner), lambda b: (0, 0)),
            pl.BlockSpec((Dc, inner), lambda b: (0, 0)),
            pl.BlockSpec((Dc, inner), lambda b: (0, 0)),
            pl.BlockSpec((inner, Dq), lambda b: (0, 0)),
            pl.BlockSpec((1, Dq), lambda b: (0, 0)),
        ],
        out_specs=pl.BlockSpec((bb, N, Dq), lambda b: (b, 0, 0)),
        scratch_shapes=[pltpu.VMEM((bb * N, inner), jnp.float32)],
        compiler_params=pltpu.CompilerParams(
            dimension_semantics=("parallel",),
            vmem_limit_bytes=48 * 1024 * 1024),
        cost_estimate=cost,
    )(x, context, wq, wk, wv, wo, bo)


def attention_reference(x, context, w_q, w_kv, w_o, b_o, heads, scale):
    """Pure-JAX f32 mirror of the PyTorch forward (dropout=0, mask=None)."""
    q = x @ w_q.T
    kv = context @ w_kv.T
    k, v = jnp.split(kv, 2, axis=-1)
    B, N, inner = q.shape
    Dh = inner // heads

    def split_heads(t):
        b, n, _ = t.shape
        return t.reshape(b, n, heads, Dh).transpose(0, 2, 1, 3).reshape(b * heads, n, Dh)

    q, k, v = map(split_heads, (q, k, v))
    sim = jnp.einsum('bid,bjd->bij', q, k) * scale
    attn = jax.nn.softmax(sim, axis=-1)
    out = jnp.einsum('bij,bjd->bid', attn, v)
    out = out.reshape(B, heads, N, Dh).transpose(0, 2, 1, 3).reshape(B, N, inner)
    return out @ w_o.T + b_o


if __name__ == "__main__":
    # Small shapes consistent with Attention(query_dim, context_dim, heads, dim_head)
    query_dim, context_dim = 32, 24
    heads, dim_head = 2, 16
    inner_dim = heads * dim_head
    scale = dim_head ** (-0.5)
    B, N, M = 2, 8, 8

    key = jax.random.PRNGKey(0)
    k1, k2, k3, k4, k5, k6 = jax.random.split(key, 6)

    # Deterministic parameter init (PyTorch Linear stores weight as (out, in)).
    w_q = 0.02 * jax.random.normal(k1, (inner_dim, query_dim), jnp.float32)
    w_kv = 0.02 * jax.random.normal(k2, (2 * inner_dim, context_dim), jnp.float32)
    w_o = 0.02 * jax.random.normal(k3, (query_dim, inner_dim), jnp.float32)
    b_o = 0.02 * jax.random.normal(k4, (query_dim,), jnp.float32)

    x = jax.random.normal(k5, (B, N, query_dim), jnp.float32)
    context = jax.random.normal(k6, (B, M, context_dim), jnp.float32)

    out = attention_pallas(x, context, w_q, w_kv, w_o, b_o,
                           heads=heads, dim_head=dim_head, scale=scale)
    out = jax.block_until_ready(out)

    ref = attention_reference(x, context, w_q, w_kv, w_o, b_o, heads, scale)
    assert out.shape == (B, N, query_dim)
    # bf16 MXU operands -> slightly relaxed tolerance vs the f32 reference
    assert jnp.allclose(out, ref, atol=2e-3, rtol=2e-2), "mismatch vs reference"

    print("KERNEL_OK")
</pallas_src>

<mosaic_0001>
module attributes {stable_mosaic.version = 11 : i64} {
  func.func @_attention_kernel(%arg0: i32, %arg1: memref<1x8x32xf32, #tpu.memory_space<vmem>>, %arg2: memref<1x8x24xf32, #tpu.memory_space<vmem>>, %arg3: memref<32x32xbf16, #tpu.memory_space<vmem>>, %arg4: memref<24x32xbf16, #tpu.memory_space<vmem>>, %arg5: memref<24x32xbf16, #tpu.memory_space<vmem>>, %arg6: memref<32x32xbf16, #tpu.memory_space<vmem>>, %arg7: memref<1x32xf32, #tpu.memory_space<vmem>>, %arg8: memref<1x8x32xf32, #tpu.memory_space<vmem>>, %arg9: memref<8x32xf32, #tpu.memory_space<vmem>>) attributes {dimension_semantics = [#tpu.dimension_semantics<parallel>], iteration_bounds = array<i64: 2>, scalar_prefetch = 0 : i64, scratch_operands = 1 : i64, tpu.core_type = #tpu.core_type<tc>, window_params = [{transform_indices = @transform_0, window_bounds = array<i64: 1, 8, 32>}, {transform_indices = @transform_1, window_bounds = array<i64: 1, 8, 24>}, {pipeline_mode = #tpu.pipeline_mode<synchronous>, transform_indices = @transform_2, window_bounds = array<i64: 32, 32>}, {pipeline_mode = #tpu.pipeline_mode<synchronous>, transform_indices = @transform_3, window_bounds = array<i64: 24, 32>}, {pipeline_mode = #tpu.pipeline_mode<synchronous>, transform_indices = @transform_4, window_bounds = array<i64: 24, 32>}, {pipeline_mode = #tpu.pipeline_mode<synchronous>, transform_indices = @transform_5, window_bounds = array<i64: 32, 32>}, {pipeline_mode = #tpu.pipeline_mode<synchronous>, transform_indices = @transform_6, window_bounds = array<i64: 1, 32>}, {transform_indices = @transform_7, window_bounds = array<i64: 1, 8, 32>}]} {
    %c0 = arith.constant 0 : index
    %c0_0 = arith.constant 0 : index
    %c0_1 = arith.constant 0 : index
    %0 = vector.load %arg1[%c0, %c0_0, %c0_1] : memref<1x8x32xf32, #tpu.memory_space<vmem>>, vector<1x8x32xf32>
    %1 = vector.shape_cast %0 : vector<1x8x32xf32> to vector<8x32xf32>
    %2 = arith.truncf %1 : vector<8x32xf32> to vector<8x32xbf16>
    %c0_2 = arith.constant 0 : index
    %c0_3 = arith.constant 0 : index
    %c0_4 = arith.constant 0 : index
    %3 = vector.load %arg2[%c0_2, %c0_3, %c0_4] : memref<1x8x24xf32, #tpu.memory_space<vmem>>, vector<1x8x24xf32>
    %4 = vector.shape_cast %3 : vector<1x8x24xf32> to vector<8x24xf32>
    %5 = arith.truncf %4 : vector<8x24xf32> to vector<8x24xbf16>
    %c0_5 = arith.constant 0 : index
    %c0_6 = arith.constant 0 : index
    %6 = vector.load %arg3[%c0_5, %c0_6] : memref<32x32xbf16, #tpu.memory_space<vmem>>, vector<32x32xbf16>
    %cst = arith.constant dense<0.000000e+00> : vector<8x32xf32>
    %7 = tpu.matmul %2, %6, %cst {dimension_numbers = #tpu.dot_dimension_numbers<[1], [0], [0], [1], [0, 0, 1, 1], [], []>} : vector<8x32xbf16>, vector<32x32xbf16>, vector<8x32xf32> -> vector<8x32xf32>
    %c0_7 = arith.constant 0 : index
    %c0_8 = arith.constant 0 : index
    %8 = vector.load %arg4[%c0_7, %c0_8] : memref<24x32xbf16, #tpu.memory_space<vmem>>, vector<24x32xbf16>
    %cst_9 = arith.constant dense<0.000000e+00> : vector<8x32xf32>
    %9 = tpu.matmul %5, %8, %cst_9 {dimension_numbers = #tpu.dot_dimension_numbers<[1], [0], [0], [1], [0, 0, 1, 1], [], []>} : vector<8x24xbf16>, vector<24x32xbf16>, vector<8x32xf32> -> vector<8x32xf32>
    %c0_10 = arith.constant 0 : index
    %c0_11 = arith.constant 0 : index
    %10 = vector.load %arg5[%c0_10, %c0_11] : memref<24x32xbf16, #tpu.memory_space<vmem>>, vector<24x32xbf16>
    %cst_12 = arith.constant dense<0.000000e+00> : vector<8x32xf32>
    %11 = tpu.matmul %5, %10, %cst_12 {dimension_numbers = #tpu.dot_dimension_numbers<[1], [0], [0], [1], [0, 0, 1, 1], [], []>} : vector<8x24xbf16>, vector<24x32xbf16>, vector<8x32xf32> -> vector<8x32xf32>
    %12 = arith.truncf %7 : vector<8x32xf32> to vector<8x32xbf16>
    %13 = arith.truncf %9 : vector<8x32xf32> to vector<8x32xbf16>
    %14 = arith.truncf %11 : vector<8x32xf32> to vector<8x32xbf16>
    %15 = vector.extract_strided_slice %12 {offsets = [0, 0], sizes = [8, 16], strides = [1, 1]} : vector<8x32xbf16> to vector<8x16xbf16>
    %16 = vector.extract_strided_slice %13 {offsets = [0, 0], sizes = [8, 16], strides = [1, 1]} : vector<8x32xbf16> to vector<8x16xbf16>
    %17 = vector.extract_strided_slice %14 {offsets = [0, 0], sizes = [8, 16], strides = [1, 1]} : vector<8x32xbf16> to vector<8x16xbf16>
    %cst_13 = arith.constant dense<0.000000e+00> : vector<8x8xf32>
    %18 = tpu.matmul %15, %16, %cst_13 {dimension_numbers = #tpu.dot_dimension_numbers<[1], [1], [0], [0], [0, 0, 1, 0], [], []>} : vector<8x16xbf16>, vector<8x16xbf16>, vector<8x8xf32> -> vector<8x8xf32>
    %cst_14 = arith.constant dense<0xFF800000> : vector<8xf32>
    %19 = vector.multi_reduction <maximumf>, %18, %cst_14 [1] : vector<8x8xf32> to vector<8xf32>
    %20 = vector.shape_cast %19 : vector<8xf32> to vector<8x1xf32>
    %21 = vector.broadcast %20 : vector<8x1xf32> to vector<8x8xf32>
    %22 = arith.subf %18, %21 : vector<8x8xf32>
    %23 = math.exp %22 : vector<8x8xf32>
    %cst_15 = arith.constant dense<0.000000e+00> : vector<8xf32>
    %24 = vector.multi_reduction <add>, %23, %cst_15 [1] : vector<8x8xf32> to vector<8xf32>
    %25 = vector.shape_cast %24 : vector<8xf32> to vector<8x1xf32>
    %26 = arith.truncf %23 : vector<8x8xf32> to vector<8x8xbf16>
    %cst_16 = arith.constant dense<0.000000e+00> : vector<8x16xf32>
    %27 = tpu.matmul %26, %17, %cst_16 {dimension_numbers = #tpu.dot_dimension_numbers<[1], [0], [0], [1], [0, 0, 1, 1], [], []>} : vector<8x8xbf16>, vector<8x16xbf16>, vector<8x16xf32> -> vector<8x16xf32>
    %28 = tpu.reciprocal %25 : vector<8x1xf32> -> vector<8x1xf32>
    %29 = vector.broadcast %28 : vector<8x1xf32> to vector<8x16xf32>
    %30 = arith.mulf %27, %29 : vector<8x16xf32>
    %c0_17 = arith.constant 0 : index
    %c0_18 = arith.constant 0 : index
    %31 = vector.load %arg9[%c0_17, %c0_18] : memref<8x32xf32, #tpu.memory_space<vmem>>, vector<8x16xf32>
    tpu.vector_store %arg9[%c0_17, %c0_18], %30 {strides = array<i32>} : memref<8x32xf32, #tpu.memory_space<vmem>>, vector<8x16xf32>,
    %32 = vector.extract_strided_slice %12 {offsets = [0, 16], sizes = [8, 16], strides = [1, 1]} : vector<8x32xbf16> to vector<8x16xbf16>
    %33 = vector.extract_strided_slice %13 {offsets = [0, 16], sizes = [8, 16], strides = [1, 1]} : vector<8x32xbf16> to vector<8x16xbf16>
    %34 = vector.extract_strided_slice %14 {offsets = [0, 16], sizes = [8, 16], strides = [1, 1]} : vector<8x32xbf16> to vector<8x16xbf16>
    %cst_19 = arith.constant dense<0.000000e+00> : vector<8x8xf32>
    %35 = tpu.matmul %32, %33, %cst_19 {dimension_numbers = #tpu.dot_dimension_numbers<[1], [1], [0], [0], [0, 0, 1, 0], [], []>} : vector<8x16xbf16>, vector<8x16xbf16>, vector<8x8xf32> -> vector<8x8xf32>
    %cst_20 = arith.constant dense<0xFF800000> : vector<8xf32>
    %36 = vector.multi_reduction <maximumf>, %35, %cst_20 [1] : vector<8x8xf32> to vector<8xf32>
    %37 = vector.shape_cast %36 : vector<8xf32> to vector<8x1xf32>
    %38 = vector.broadcast %37 : vector<8x1xf32> to vector<8x8xf32>
    %39 = arith.subf %35, %38 : vector<8x8xf32>
    %40 = math.exp %39 : vector<8x8xf32>
    %cst_21 = arith.constant dense<0.000000e+00> : vector<8xf32>
    %41 = vector.multi_reduction <add>, %40, %cst_21 [1] : vector<8x8xf32> to vector<8xf32>
    %42 = vector.shape_cast %41 : vector<8xf32> to vector<8x1xf32>
    %43 = arith.truncf %40 : vector<8x8xf32> to vector<8x8xbf16>
    %cst_22 = arith.constant dense<0.000000e+00> : vector<8x16xf32>
    %44 = tpu.matmul %43, %34, %cst_22 {dimension_numbers = #tpu.dot_dimension_numbers<[1], [0], [0], [1], [0, 0, 1, 1], [], []>} : vector<8x8xbf16>, vector<8x16xbf16>, vector<8x16xf32> -> vector<8x16xf32>
    %45 = tpu.reciprocal %42 : vector<8x1xf32> -> vector<8x1xf32>
    %46 = vector.broadcast %45 : vector<8x1xf32> to vector<8x16xf32>
    %47 = arith.mulf %44, %46 : vector<8x16xf32>
    %c0_23 = arith.constant 0 : index
    %c16 = arith.constant 16 : index
    %48 = vector.load %arg9[%c0_23, %c16] : memref<8x32xf32, #tpu.memory_space<vmem>>, vector<8x16xf32>
    tpu.vector_store %arg9[%c0_23, %c16], %47 {strides = array<i32>} : memref<8x32xf32, #tpu.memory_space<vmem>>, vector<8x16xf32>,
    %c0_24 = arith.constant 0 : index
    %c0_25 = arith.constant 0 : index
    %49 = vector.load %arg9[%c0_24, %c0_25] : memref<8x32xf32, #tpu.memory_space<vmem>>, vector<8x32xf32>
    %50 = arith.truncf %49 : vector<8x32xf32> to vector<8x32xbf16>
    %c0_26 = arith.constant 0 : index
    %c0_27 = arith.constant 0 : index
    %51 = vector.load %arg6[%c0_26, %c0_27] : memref<32x32xbf16, #tpu.memory_space<vmem>>, vector<32x32xbf16>
    %cst_28 = arith.constant dense<0.000000e+00> : vector<8x32xf32>
    %52 = tpu.matmul %50, %51, %cst_28 {dimension_numbers = #tpu.dot_dimension_numbers<[1], [0], [0], [1], [0, 0, 1, 1], [], []>} : vector<8x32xbf16>, vector<32x32xbf16>, vector<8x32xf32> -> vector<8x32xf32>
    %c0_29 = arith.constant 0 : index
    %c0_30 = arith.constant 0 : index
    %53 = vector.load %arg7[%c0_29, %c0_30] : memref<1x32xf32, #tpu.memory_space<vmem>>, vector<1x32xf32>
    %54 = vector.broadcast %53 : vector<1x32xf32> to vector<8x32xf32>
    %55 = arith.addf %52, %54 : vector<8x32xf32>
    %56 = vector.shape_cast %55 : vector<8x32xf32> to vector<1x8x32xf32>
    %c0_31 = arith.constant 0 : index
    %c0_32 = arith.constant 0 : index
    %c0_33 = arith.constant 0 : index
    %57 = vector.load %arg8[%c0_31, %c0_32, %c0_33] : memref<1x8x32xf32, #tpu.memory_space<vmem>>, vector<1x8x32xf32>
    tpu.vector_store %arg8[%c0_31, %c0_32, %c0_33], %56 {strides = array<i32>} : memref<1x8x32xf32, #tpu.memory_space<vmem>>, vector<1x8x32xf32>,
    return
  }
  func.func @transform_0(%arg0: i32) -> (i32, i32, i32) {
    %c0_i32 = arith.constant 0 : i32
    %c0_i32_0 = arith.constant 0 : i32
    %c0_i32_1 = arith.constant 0 : i32
    return %arg0, %c0_i32, %c0_i32_0 : i32, i32, i32
  }
  func.func @transform_1(%arg0: i32) -> (i32, i32, i32) {
    %c0_i32 = arith.constant 0 : i32
    %c0_i32_0 = arith.constant 0 : i32
    %c0_i32_1 = arith.constant 0 : i32
    return %arg0, %c0_i32, %c0_i32_0 : i32, i32, i32
  }
  func.func @transform_2(%arg0: i32) -> (i32, i32) {
    %c0_i32 = arith.constant 0 : i32
    %c0_i32_0 = arith.constant 0 : i32
    %c0_i32_1 = arith.constant 0 : i32
    return %c0_i32, %c0_i32_0 : i32, i32
  }
  func.func @transform_3(%arg0: i32) -> (i32, i32) {
    %c0_i32 = arith.constant 0 : i32
    %c0_i32_0 = arith.constant 0 : i32
    %c0_i32_1 = arith.constant 0 : i32
    return %c0_i32, %c0_i32_0 : i32, i32
  }
  func.func @transform_4(%arg0: i32) -> (i32, i32) {
    %c0_i32 = arith.constant 0 : i32
    %c0_i32_0 = arith.constant 0 : i32
    %c0_i32_1 = arith.constant 0 : i32
    return %c0_i32, %c0_i32_0 : i32, i32
  }
  func.func @transform_5(%arg0: i32) -> (i32, i32) {
    %c0_i32 = arith.constant 0 : i32
    %c0_i32_0 = arith.constant 0 : i32
    %c0_i32_1 = arith.constant 0 : i32
    return %c0_i32, %c0_i32_0 : i32, i32
  }
  func.func @transform_6(%arg0: i32) -> (i32, i32) {
    %c0_i32 = arith.constant 0 : i32
    %c0_i32_0 = arith.constant 0 : i32
    %c0_i32_1 = arith.constant 0 : i32
    return %c0_i32, %c0_i32_0 : i32, i32
  }
  func.func @transform_7(%arg0: i32) -> (i32, i32, i32) {
    %c0_i32 = arith.constant 0 : i32
    %c0_i32_0 = arith.constant 0 : i32
    %c0_i32_1 = arith.constant 0 : i32
    return %arg0, %c0_i32, %c0_i32_0 : i32, i32, i32
  }
}

</mosaic_0001>

<llo_original>
// kernel: tpu_custom_call.1
$region0: #{tpu_custom_call.1}
  #allocation0 [shape = 'u32[]', space=smem, size = 0x4, offset = 0x4, fixed_abs, tag = 'smem constant byte address 0x4 - core index']
  #allocation1 [shape = 'u32[144,128]{1,0:T(1,128)}', space=vmem, size = 0x12000, scoped, tag = 'internal scratch']
  #allocation2 [shape = 'f32[8,32]{1,0:T(8,128)}', space=vmem, size = 0x1000, scoped, tag = 'scratch operand']
  %s0 = inlined_call_operand.hbm [shape: f32[2,8,32], index: 0, kind: input, shape index: {}]
  %s1 = inlined_call_operand.hbm [shape: f32[2,8,24], index: 1, kind: input, shape index: {}]
  %s2 = inlined_call_operand.hbm [shape: bf16[32,32], index: 2, kind: input, shape index: {}]
  %s3 = inlined_call_operand.hbm [shape: bf16[24,32], index: 3, kind: input, shape index: {}]
  %s4 = inlined_call_operand.hbm [shape: bf16[24,32], index: 4, kind: input, shape index: {}]
  %s5 = inlined_call_operand.vmem [shape: bf16[32,32], index: 5, kind: input, shape index: {}]
  %s6 = inlined_call_operand.vmem [shape: f32[1,32], index: 6, kind: input, shape index: {}]
  %s7 = inlined_call_operand.hbm [shape: f32[2,8,32], index: 7, kind: output, shape index: {}]
  %s8 = sld [smem:[#allocation0]]
  $region81: #{tpu_custom_call.1} parent=0
    _
  %s10 = ssub.s32 1, %s8
  %s11 = scalar_select 0, %s10, %s8
  $region1: #{tpu_custom_call.1} parent=0
    #allocation3 [shape = 'u8[8192]{0}', space=vmem, size = 0x2000, scoped, tag = 'input window, operand 0']
    #allocation4 [shape = 's32[2]{0}', space=sflag, size = 0x8, scoped, tag = 'scoped memory for tpu_custom_call.1']
    #allocation5 [shape = 's32[2]{0}', space=sflag, size = 0x8, scoped, tag = 'scoped memory for tpu_custom_call.1']
    #allocation6 [shape = 'u8[8192]{0}', space=vmem, size = 0x2000, scoped, tag = 'input window, operand 1']
    #allocation7 [shape = 's32[2]{0}', space=sflag, size = 0x8, scoped, tag = 'scoped memory for tpu_custom_call.1']
    #allocation8 [shape = 'u8[8192]{0}', space=vmem, size = 0x2000, scoped, tag = 'input window, operand 2, single buffered']
    #allocation9 [shape = 'u8[6144]{0}', space=vmem, size = 0x1800, scoped, tag = 'input window, operand 3, single buffered']
    #allocation10 [shape = 's32[1]{0}', space=sflag, size = 0x4, scoped, tag = 'scoped memory for tpu_custom_call.1']
    #allocation11 [shape = 'u8[6144]{0}', space=vmem, size = 0x1800, scoped, tag = 'input window, operand 4, single buffered']
    #allocation12 [shape = 'u8[8192]{0}', space=vmem, size = 0x2000, scoped, tag = 'output window, operand 0']
    %12 = vsyncpa [#allocation4], 0
    %s13 = scalar_lea.sflag [#allocation4], 1
    %14 = vsyncpa %s13, 0
    %15 = vsyncpa [#allocation7], 0
    %s16 = scalar_lea.sflag [#allocation7], 1
    %17 = vsyncpa %s16, 0
    %18 = vsyncpa [#allocation10], 0
    %19 = vsyncpa [#allocation5], 0
    %s20 = scalar_lea.sflag [#allocation5], 1
    %21 = vsyncpa %s20, 0
    loop: start=0, step=1, limit=4
    $region2: #{tpu_custom_call.1} parent=1 // loop_pre_header
      _
    $region3: #{tpu_custom_call.1} parent=1 // loop_header
      %s23 = sphi 0, %s27
      %p24 = scmp.ge.s32.totalorder %s23, 4
      %s33 = sphi 0, %s35
      %s36 = sphi 0, %s33
      %s37 = sphi 0, %s36
      %s53 = sphi 0, %s37
      %s59 = sphi 0, %s61
      %s62 = sphi 0, %s59
      %s63 = sphi 0, %s62
      %s79 = sphi 0, %s63
      %s83 = sphi 0, %s83
      %s85 = sphi 0, %s83
      %s86 = sphi 0, %s85
      %s100 = sphi 0, %s86
      %s104 = sphi 0, %s104
      %s106 = sphi 0, %s104
      %s107 = sphi 0, %s106
      %s121 = sphi 0, %s107
      %s125 = sphi 0, %s125
      %s127 = sphi 0, %s125
      %s128 = sphi 0, %s127
      %s142 = sphi 0, %s128
      %s146 = sphi 0, %s146
      %s148 = sphi 0, %s146
      %s149 = sphi 0, %s148
      %s163 = sphi 0, %s149
      %s167 = sphi 0, %s167
      %s169 = sphi 0, %s167
      %s170 = sphi 0, %s169
      %s184 = sphi 0, %s170
      %s190 = sphi 0, %s192
      %s193 = sphi 0, %s190
      %s194 = sphi 0, %s193
      %s210 = sphi 0, %s194
    $region4: #{tpu_custom_call.1} parent=1 // loop_header_branch
      %26 = sbr.rel (%p24) target = $region8
    $region5: #{tpu_custom_call.1} parent=1 // loop_body
      %s28 = ssub.s32 %s23, 1
      %s29 = ssub.s32 %s23, 2
      %s30 = sadd.s32 %s23, 1
      %s31 = ssub.s32 %s23, %s30
      %p32 = scmp.eq.s32.totalorder %s31, 0
      %s34 = sadd.s32 %s33, 1
      %s35 = scalar_select %p32, %s33, %s34
      %p38 = pneg %p32
      %p39 = scmp.eq.s32.totalorder %s23, 1
      %p40 = por %p38, %p39
      %p41 = scmp.ne.s32.totalorder %s33, %s36
      %p42 = scmp.eq.s32.totalorder %s23, 0
      %p43 = por %p41, %p42
      %p44 = scmp.ne.s32.totalorder %s33, %s36
      %p45 = scmp.eq.s32.totalorder %s28, 1
      %p46 = por %p44, %p45
      %p47 = scmp.ne.s32.totalorder %s36, %s37
      %p48 = scmp.eq.s32.totalorder %s28, 0
      %p49 = por %p47, %p48
      %p50 = scmp.ne.s32.totalorder %s36, %s37
      %p51 = scmp.eq.s32.totalorder %s29, 1
      %p52 = por %p50, %p51
      %p54 = scmp.ne.s32.totalorder %s37, %s53
      %p55 = scmp.eq.s32.totalorder %s29, 0
      %p56 = por %p54, %p55
      %s57 = ssub.s32 %s23, %s30
      %p58 = scmp.eq.s32.totalorder %s57, 0
      %s60 = sadd.s32 %s59, 1
      %s61 = scalar_select %p58, %s59, %s60
      %p64 = pneg %p58
      %p65 = scmp.eq.s32.totalorder %s23, 1
      %p66 = por %p64, %p65
      %p67 = scmp.ne.s32.totalorder %s59, %s62
      %p68 = scmp.eq.s32.totalorder %s23, 0
      %p69 = por %p67, %p68
      %p70 = scmp.ne.s32.totalorder %s59, %s62
      %p71 = scmp.eq.s32.totalorder %s28, 1
      %p72 = por %p70, %p71
      %p73 = scmp.ne.s32.totalorder %s62, %s63
      %p74 = scmp.eq.s32.totalorder %s28, 0
      %p75 = por %p73, %p74
      %p76 = scmp.ne.s32.totalorder %s62, %s63
      %p77 = scmp.eq.s32.totalorder %s29, 1
      %p78 = por %p76, %p77
      %p80 = scmp.ne.s32.totalorder %s63, %s79
      %p81 = scmp.eq.s32.totalorder %s29, 0
      %p82 = por %p80, %p81
      %s84 = sadd.s32 %s83, 1
      %p87 = scmp.eq.s32.totalorder %s23, 1
      %p88 = scmp.ne.s32.totalorder %s83, %s85
      %p89 = scmp.eq.s32.totalorder %s23, 0
      %p90 = por %p88, %p89
      %p91 = scmp.ne.s32.totalorder %s83, %s85
      %p92 = scmp.eq.s32.totalorder %s28, 1
      %p93 = por %p91, %p92
      %p94 = scmp.ne.s32.totalorder %s85, %s86
      %p95 = scmp.eq.s32.totalorder %s28, 0
      %p96 = por %p94, %p95
      %p97 = scmp.ne.s32.totalorder %s85, %s86
      %p98 = scmp.eq.s32.totalorder %s29, 1
      %p99 = por %p97, %p98
      %p101 = scmp.ne.s32.totalorder %s86, %s100
      %p102 = scmp.eq.s32.totalorder %s29, 0
      %p103 = por %p101, %p102
      %s105 = sadd.s32 %s104, 1
      %p108 = scmp.eq.s32.totalorder %s23, 1
      %p109 = scmp.ne.s32.totalorder %s104, %s106
      %p110 = scmp.eq.s32.totalorder %s23, 0
      %p111 = por %p109, %p110
      %p112 = scmp.ne.s32.totalorder %s104, %s106
      %p113 = scmp.eq.s32.totalorder %s28, 1
      %p114 = por %p112, %p113
      %p115 = scmp.ne.s32.totalorder %s106, %s107
      %p116 = scmp.eq.s32.totalorder %s28, 0
      %p117 = por %p115, %p116
      %p118 = scmp.ne.s32.totalorder %s106, %s107
      %p119 = scmp.eq.s32.totalorder %s29, 1
      %p120 = por %p118, %p119
      %p122 = scmp.ne.s32.totalorder %s107, %s121
      %p123 = scmp.eq.s32.totalorder %s29, 0
      %p124 = por %p122, %p123
      %s126 = sadd.s32 %s125, 1
      %p129 = scmp.eq.s32.totalorder %s23, 1
      %p130 = scmp.ne.s32.totalorder %s125, %s127
      %p131 = scmp.eq.s32.totalorder %s23, 0
      %p132 = por %p130, %p131
      %p133 = scmp.ne.s32.totalorder %s125, %s127
      %p134 = scmp.eq.s32.totalorder %s28, 1
      %p135 = por %p133, %p134
      %p136 = scmp.ne.s32.totalorder %s127, %s128
      %p137 = scmp.eq.s32.totalorder %s28, 0
      %p138 = por %p136, %p137
      %p139 = scmp.ne.s32.totalorder %s127, %s128
      %p140 = scmp.eq.s32.totalorder %s29, 1
      %p141 = por %p139, %p140
      %p143 = scmp.ne.s32.totalorder %s128, %s142
      %p144 = scmp.eq.s32.totalorder %s29, 0
      %p145 = por %p143, %p144
      %s147 = sadd.s32 %s146, 1
      %p150 = scmp.eq.s32.totalorder %s23, 1
      %p151 = scmp.ne.s32.totalorder %s146, %s148
      %p152 = scmp.eq.s32.totalorder %s23, 0
      %p153 = por %p151, %p152
      %p154 = scmp.ne.s32.totalorder %s146, %s148
      %p155 = scmp.eq.s32.totalorder %s28, 1
      %p156 = por %p154, %p155
      %p157 = scmp.ne.s32.totalorder %s148, %s149
      %p158 = scmp.eq.s32.totalorder %s28, 0
      %p159 = por %p157, %p158
      %p160 = scmp.ne.s32.totalorder %s148, %s149
      %p161 = scmp.eq.s32.totalorder %s29, 1
      %p162 = por %p160, %p161
      %p164 = scmp.ne.s32.totalorder %s149, %s163
      %p165 = scmp.eq.s32.totalorder %s29, 0
      %p166 = por %p164, %p165
      %s168 = sadd.s32 %s167, 1
      %p171 = scmp.eq.s32.totalorder %s23, 1
      %p172 = scmp.ne.s32.totalorder %s167, %s169
      %p173 = scmp.eq.s32.totalorder %s23, 0
      %p174 = por %p172, %p173
      %p175 = scmp.ne.s32.totalorder %s167, %s169
      %p176 = scmp.eq.s32.totalorder %s28, 1
      %p177 = por %p175, %p176
      %p178 = scmp.ne.s32.totalorder %s169, %s170
      %p179 = scmp.eq.s32.totalorder %s28, 0
      %p180 = por %p178, %p179
      %p181 = scmp.ne.s32.totalorder %s169, %s170
      %p182 = scmp.eq.s32.totalorder %s29, 1
      %p183 = por %p181, %p182
      %p185 = scmp.ne.s32.totalorder %s170, %s184
      %p186 = scmp.eq.s32.totalorder %s29, 0
      %p187 = por %p185, %p186
      %s188 = ssub.s32 %s23, %s30
      %p189 = scmp.eq.s32.totalorder %s188, 0
      %s191 = sadd.s32 %s190, 1
      %s192 = scalar_select %p189, %s190, %s191
      %p195 = pneg %p189
      %p196 = scmp.eq.s32.totalorder %s23, 1
      %p197 = por %p195, %p196
      %p198 = scmp.ne.s32.totalorder %s190, %s193
      %p199 = scmp.eq.s32.totalorder %s23, 0
      %p200 = por %p198, %p199
      %p201 = scmp.ne.s32.totalorder %s190, %s193
      %p202 = scmp.eq.s32.totalorder %s28, 1
      %p203 = por %p201, %p202
      %p204 = scmp.ne.s32.totalorder %s193, %s194
      %p205 = scmp.eq.s32.totalorder %s28, 0
      %p206 = por %p204, %p205
      %p207 = scmp.ne.s32.totalorder %s193, %s194
      %p208 = scmp.eq.s32.totalorder %s29, 1
      %p209 = por %p207, %p208
      %p211 = scmp.ne.s32.totalorder %s194, %s210
      %p212 = scmp.eq.s32.totalorder %s29, 0
      %p213 = por %p211, %p212
      %p214 = scmp.le.s32.totalorder 1, %s23
      %p215 = scmp.lt.s32.totalorder %s23, 3
      %p216 = pnand %p214, %p215
      %p217 = pneg %p216
      // Predicated region
      $region9: #{tpu_custom_call.1} parent=5 // pred_check
        _
      $region10: #{tpu_custom_call.1} parent=5 // pred_check_branch
        %219 = sbr.rel (%p216) target = $region12
      $region11: #{tpu_custom_call.1} parent=5 // pred_region
        %s220 = ssub.s32 %s23, 1
        // Predicated region
        $region13: #{tpu_custom_call.1} parent=11 // pred_check
          %p221 = pneg %p96
        $region14: #{tpu_custom_call.1} parent=11 // pred_check_branch
          %223 = sbr.rel (%p221) target = $region16
        $region15: #{tpu_custom_call.1} parent=11 // pred_region
          %s225 = ssub.s32 256, 256
          %226 = vsyncadd [#allocation7], %s225
          %s227 = sshll.u32 [#allocation8], 4
          %s228 = int_to_ptr.vmem [resolvable:$true] %s227
          %233 = dma.hbm_to_vmem [thread:$0]  %s2, 256, %s228, [#allocation7], 64, 64, 4
        $region16: #{tpu_custom_call.1} parent=11 // pred_fallthru
          _
        // Predicated region
        $region17: #{tpu_custom_call.1} parent=11 // pred_check
          %p234 = pneg %p117
        $region18: #{tpu_custom_call.1} parent=11 // pred_check_branch
          %236 = sbr.rel (%p234) target = $region20
        $region19: #{tpu_custom_call.1} parent=11 // pred_region
          %s238 = ssub.s32 192, 192
          %239 = vsyncadd [#allocation10], %s238
          %s240 = sshll.u32 [#allocation9], 4
          %s241 = int_to_ptr.vmem [resolvable:$true] %s240
          %246 = dma.hbm_to_vmem [thread:$0]  %s3, 192, %s241, [#allocation10], 64, 64, 4
        $region20: #{tpu_custom_call.1} parent=11 // pred_fallthru
          _
        // Predicated region
        $region21: #{tpu_custom_call.1} parent=11 // pred_check
          %p247 = pneg %p138
        $region22: #{tpu_custom_call.1} parent=11 // pred_check_branch
          %249 = sbr.rel (%p247) target = $region24
        $region23: #{tpu_custom_call.1} parent=11 // pred_region
          %s251 = ssub.s32 192, 192
          %252 = vsyncadd [#allocation10], %s251
          %s253 = sshll.u32 [#allocation11], 4
          %s254 = int_to_ptr.vmem [resolvable:$true] %s253
          %259 = dma.hbm_to_vmem [thread:$0]  %s4, 192, %s254, [#allocation10], 64, 64, 4
        $region24: #{tpu_custom_call.1} parent=11 // pred_fallthru
          _
        // Predicated region
        $region25: #{tpu_custom_call.1} parent=11 // pred_check
          %p260 = pneg %p159
        $region26: #{tpu_custom_call.1} parent=11 // pred_check_branch
          %262 = sbr.rel (%p260) target = $region28
        $region27: #{tpu_custom_call.1} parent=11 // pred_region
          _
        $region28: #{tpu_custom_call.1} parent=11 // pred_fallthru
          _
        // Predicated region
        $region29: #{tpu_custom_call.1} parent=11 // pred_check
          %p263 = pneg %p180
        $region30: #{tpu_custom_call.1} parent=11 // pred_check_branch
          %265 = sbr.rel (%p263) target = $region32
        $region31: #{tpu_custom_call.1} parent=11 // pred_region
          _
        $region32: #{tpu_custom_call.1} parent=11 // pred_fallthru
          _
      $region12: #{tpu_custom_call.1} parent=5 // pred_fallthru
        _
      %p266 = scmp.lt.s32.totalorder %s23, 2
      // Predicated region
      $region33: #{tpu_custom_call.1} parent=5 // pred_check
        %p267 = pneg %p266
      $region34: #{tpu_custom_call.1} parent=5 // pred_check_branch
        %269 = sbr.rel (%p267) target = $region36
      $region35: #{tpu_custom_call.1} parent=5 // pred_region
        // Predicated region
        $region37: #{tpu_custom_call.1} parent=35 // pred_check
          %p270 = pneg %p43
        $region38: #{tpu_custom_call.1} parent=35 // pred_check_branch
          %272 = sbr.rel (%p270) target = $region40
        $region39: #{tpu_custom_call.1} parent=35 // pred_region
          %s273 = sand.u32 %s33, 1
          %s274 = scalar_lea.sflag [#allocation4], %s273
          %s275 = sand.u32 %s33, 1
          %s276 = smul.addr %s275, 8
          %s277 = scalar_lea.vmem [#allocation3], %s276
          %s279 = ssub.s32 128, 128
          %280 = vsyncadd %s274, %s279
          %s281 = smul.addr %s23, 128
          %s282 = scalar_lea.hbm %s0, %s281
          %s284 = sshll.u32 %s277, 4
          %s285 = int_to_ptr.vmem [resolvable:$true] %s284
          %287 = dma.hbm_to_vmem [thread:$0]  %s282, 128, %s285, %s274
        $region40: #{tpu_custom_call.1} parent=35 // pred_fallthru
          _
        // Predicated region
        $region41: #{tpu_custom_call.1} parent=35 // pred_check
          %p288 = pneg %p69
        $region42: #{tpu_custom_call.1} parent=35 // pred_check_branch
          %290 = sbr.rel (%p288) target = $region44
        $region43: #{tpu_custom_call.1} parent=35 // pred_region
          %s291 = sand.u32 %s23, 1
          %s292 = scalar_lea.sflag [#allocation7], %s291
          %s293 = sand.u32 %s59, 1
          %s294 = smul.addr %s293, 8
          %s295 = scalar_lea.vmem [#allocation6], %s294
          %s297 = ssub.s32 128, 128
          %298 = vsyncadd %s292, %s297
          %s299 = smul.addr %s23, 128
          %s300 = scalar_lea.hbm %s1, %s299
          %s302 = sshll.u32 %s295, 4
          %s303 = int_to_ptr.vmem [resolvable:$true] %s302
          %305 = dma.hbm_to_vmem [thread:$0]  %s300, 128, %s303, %s292
        $region44: #{tpu_custom_call.1} parent=35 // pred_fallthru
          _
      $region36: #{tpu_custom_call.1} parent=5 // pred_fallthru
        _
      %p306 = scmp.le.s32.totalorder 1, %s23
      %p307 = scmp.lt.s32.totalorder %s23, 3
      %p308 = pnand %p306, %p307
      %p309 = pneg %p308
      // Predicated region
      $region45: #{tpu_custom_call.1} parent=5 // pred_check
        _
      $region46: #{tpu_custom_call.1} parent=5 // pred_check_branch
        %311 = sbr.rel (%p308) target = $region48
      $region47: #{tpu_custom_call.1} parent=5 // pred_region
        %s312 = ssub.s32 %s23, 1
        %s313 = sand.u32 %s36, 1
        %s314 = scalar_lea.sflag [#allocation4], %s313
        %s315 = sand.u32 %s36, 1
        %s316 = smul.addr %s315, 8
        %s317 = scalar_lea.vmem [#allocation3], %s316
        // Predicated region
        $region49: #{tpu_custom_call.1} parent=47 // pred_check
          %p318 = pneg %p49
        $region50: #{tpu_custom_call.1} parent=47 // pred_check_branch
          %320 = sbr.rel (%p318) target = $region52
        $region51: #{tpu_custom_call.1} parent=47 // pred_region
          %321 = dma.done %s314, 128
        $region52: #{tpu_custom_call.1} parent=47 // pred_fallthru
          _
        %s322 = sand.u32 %s28, 1
        %s323 = scalar_lea.sflag [#allocation7], %s322
        %s324 = sand.u32 %s62, 1
        %s325 = smul.addr %s324, 8
        %s326 = scalar_lea.vmem [#allocation6], %s325
        // Predicated region
        $region53: #{tpu_custom_call.1} parent=47 // pred_check
          %p327 = pneg %p75
        $region54: #{tpu_custom_call.1} parent=47 // pred_check_branch
          %329 = sbr.rel (%p327) target = $region56
        $region55: #{tpu_custom_call.1} parent=47 // pred_region
          %330 = dma.done %s323, 128
        $region56: #{tpu_custom_call.1} parent=47 // pred_fallthru
          _
        // Predicated region
        $region57: #{tpu_custom_call.1} parent=47 // pred_check
          %p331 = pneg %p96
        $region58: #{tpu_custom_call.1} parent=47 // pred_check_branch
          %333 = sbr.rel (%p331) target = $region60
        $region59: #{tpu_custom_call.1} parent=47 // pred_region
          %334 = dma.done [#allocation7], 256
        $region60: #{tpu_custom_call.1} parent=47 // pred_fallthru
          _
        // Predicated region
        $region61: #{tpu_custom_call.1} parent=47 // pred_check
          %p335 = pneg %p117
        $region62: #{tpu_custom_call.1} parent=47 // pred_check_branch
          %337 = sbr.rel (%p335) target = $region64
        $region63: #{tpu_custom_call.1} parent=47 // pred_region
          %338 = dma.done [#allocation10], 192
        $region64: #{tpu_custom_call.1} parent=47 // pred_fallthru
          _
        // Predicated region
        $region65: #{tpu_custom_call.1} parent=47 // pred_check
          %p339 = pneg %p138
        $region66: #{tpu_custom_call.1} parent=47 // pred_check_branch
          %341 = sbr.rel (%p339) target = $region68
        $region67: #{tpu_custom_call.1} parent=47 // pred_region
          %342 = dma.done [#allocation10], 192
        $region68: #{tpu_custom_call.1} parent=47 // pred_fallthru
          _
        %s343 = sand.u32 %s36, 1
        %s344 = scalar_lea.sflag [#allocation4], %s343
        %s345 = sand.u32 %s36, 1
        %s346 = smul.addr %s345, 8
        %s347 = scalar_lea.vmem [#allocation3], %s346
        %p348 = pneg %p49
        %p349 = pneg %p46
        %s350 = sand.u32 %s28, 1
        %s351 = scalar_lea.sflag [#allocation7], %s350
        %s352 = sand.u32 %s62, 1
        %s353 = smul.addr %s352, 8
        %s354 = scalar_lea.vmem [#allocation6], %s353
        %p355 = pneg %p75
        %p356 = pneg %p72
        %p357 = pneg %p96
        %p358 = pneg %p93
        %p359 = pneg %p117
        %p360 = pneg %p114
        %p361 = pneg %p138
        %p362 = pneg %p135
        %p363 = pneg %p159
        %p364 = pneg %p156
        %p365 = pneg %p180
        %p366 = pneg %p177
        %p367 = pneg %p206
        %p368 = pneg %p203
        %s369 = sand.u32 %s193, 1
        %s370 = scalar_lea.sflag [#allocation5], %s369
        %s371 = sand.u32 %s193, 1
        %s372 = smul.addr %s371, 8
        %s373 = scalar_lea.vmem [#allocation12], %s372
        %v375 = vld [vmem:[%s317] sm:$0xff]
        %v376 = vpack.c.bf16 %v375, %v375
        %v377 = vld [vmem:[%s326] sm:$0xff]
        %v378 = vpack.c.bf16 %v377, %v377
        %v379 = vld [vmem:[#allocation8] sm:$0xf]
        %v380 = vld [vmem:[#allocation8 + $0x4] sm:$0xf]
        %v381 = vld [vmem:[#allocation8 + $0x8] sm:$0xf]
        %v382 = vld [vmem:[#allocation8 + $0xc] sm:$0xf]
        %v387 = vunpack.c.l.b16 %v379
        %v388 = vunpack.c.l.b16 %v380
        %v389 = vunpack.c.l.b16 %v381
        %v390 = vunpack.c.l.b16 %v382
        %v391 = vpack.c.b16 %v388, %v387
        %v392 = vpack.c.b16 %v390, %v389
        %vm395 = vcmask 261120
        %v397 = vsel %vm395, %v376, 0
        %399 = vmatprep.subr.bf16.mxu0 0
        %400 = vmatpush1.bf16.msra.mxu0 %v391
        %401 = vmatprep.subr.bf16.mxu0 0
        %402 = vmatpush1.bf16.msra.mxu0 %v392
        %403 = vmatprep.subr.bf16.mxu0 0
        %404 = vmatpush1.bf16.msra.mxu0 0
        %405 = vmatprep.subr.bf16.mxu0 0
        %406 = vmatpush1.bf16.msra.mxu0 0
        %407 = vmatprep.subr.bf16.mxu0 0
        %408 = vmatpush1.bf16.msra.mxu0 0
        %409 = vmatprep.subr.bf16.mxu0 0
        %410 = vmatpush1.bf16.msra.mxu0 0
        %411 = vmatprep.subr.bf16.mxu0 0
        %412 = vmatpush1.bf16.msra.mxu0 0
        %413 = vmatprep.subr.bf16.mxu0 0
        %414 = vmatpush1.bf16.msra.mxu0 0
        %415 = vmatprep.subr.bf16.mxu0 0
        %416 = vmatpush1.bf16.msra.mxu0 0
        %417 = vmatprep.subr.bf16.mxu0 0
        %418 = vmatpush1.bf16.msra.mxu0 0
        %419 = vmatprep.subr.bf16.mxu0 0
        %420 = vmatpush1.bf16.msra.mxu0 0
        %421 = vmatprep.subr.bf16.mxu0 0
        %422 = vmatpush1.bf16.msra.mxu0 0
        %423 = vmatprep.subr.bf16.mxu0 0
        %424 = vmatpush1.bf16.msra.mxu0 0
        %425 = vmatprep.subr.bf16.mxu0 0
        %426 = vmatpush1.bf16.msra.mxu0 0
        %427 = vmatprep.subr.bf16.mxu0 0
        %428 = vmatpush1.bf16.msra.mxu0 0
        %429 = vmatprep.subr.bf16.mxu0 0
        %430 = vmatpush1.bf16.msra.mxu0 0
        %431 = vmatprep.mubr.bf16.mxu0 0
        %432 = vmatmul.mubr.bf16.gmra.mrb[0].mxu0 %v397
        %v433 = vpop.f32.mrb[0].mxu0
        %v434 = vadd.f32 0.0, %v433
        %v435 = vpop.f32.mrb[0].mxu0
        %v436 = vpop.f32.mrb[0].mxu0
        %v437 = vpop.f32.mrb[0].mxu0
        %438 = vdwg.mxu0
        %v439 = vld [vmem:[#allocation9] sm:$0xf]
        %v440 = vld [vmem:[#allocation9 + $0x4] sm:$0xf]
        %v441 = vld [vmem:[#allocation9 + $0x8] sm:$0xf]
        %v445 = vunpack.c.l.b16 %v439
        %v446 = vunpack.c.l.b16 %v440
        %v447 = vunpack.c.l.b16 %v441
        %v448 = vpack.c.b16 %v446, %v445
        %v449 = vpack.c.b16 %v447, %v447
        %vm451 = vcmask 195584
        %v453 = vsel %vm451, %v378, 0
        %vm455 = vcmask 1043456
        %v457 = vsel %vm455, %v449, 0
        %459 = vmatprep.subr.bf16.mxu0 0
        %460 = vmatpush1.bf16.msra.mxu0 %v448
        %461 = vmatprep.subr.bf16.mxu0 0
        %462 = vmatpush1.bf16.msra.mxu0 %v457
        %463 = vmatprep.subr.bf16.mxu0 0
        %464 = vmatpush1.bf16.msra.mxu0 0
        %465 = vmatprep.subr.bf16.mxu0 0
        %466 = vmatpush1.bf16.msra.mxu0 0
        %467 = vmatprep.subr.bf16.mxu0 0
        %468 = vmatpush1.bf16.msra.mxu0 0
        %469 = vmatprep.subr.bf16.mxu0 0
        %470 = vmatpush1.bf16.msra.mxu0 0
        %471 = vmatprep.subr.bf16.mxu0 0
        %472 = vmatpush1.bf16.msra.mxu0 0
        %473 = vmatprep.subr.bf16.mxu0 0
        %474 = vmatpush1.bf16.msra.mxu0 0
        %475 = vmatprep.subr.bf16.mxu0 0
        %476 = vmatpush1.bf16.msra.mxu0 0
        %477 = vmatprep.subr.bf16.mxu0 0
        %478 = vmatpush1.bf16.msra.mxu0 0
        %479 = vmatprep.subr.bf16.mxu0 0
        %480 = vmatpush1.bf16.msra.mxu0 0
        %481 = vmatprep.subr.bf16.mxu0 0
        %482 = vmatpush1.bf16.msra.mxu0 0
        %483 = vmatprep.subr.bf16.mxu0 0
        %484 = vmatpush1.bf16.msra.mxu0 0
        %485 = vmatprep.subr.bf16.mxu0 0
        %486 = vmatpush1.bf16.msra.mxu0 0
        %487 = vmatprep.subr.bf16.mxu0 0
        %488 = vmatpush1.bf16.msra.mxu0 0
        %489 = vmatprep.subr.bf16.mxu0 0
        %490 = vmatpush1.bf16.msra.mxu0 0
        %491 = vmatprep.mubr.bf16.mxu0 0
        %492 = vmatmul.mubr.bf16.gmra.mrb[0].mxu0 %v453
        %v493 = vpop.f32.mrb[0].mxu0
        %v494 = vadd.f32 0.0, %v493
        %v495 = vpop.f32.mrb[0].mxu0
        %v496 = vpop.f32.mrb[0].mxu0
        %v497 = vpop.f32.mrb[0].mxu0
        %498 = vdwg.mxu0
        %v499 = vld [vmem:[#allocation11] sm:$0xf]
        %v500 = vld [vmem:[#allocation11 + $0x4] sm:$0xf]
        %v501 = vld [vmem:[#allocation11 + $0x8] sm:$0xf]
        %v505 = vunpack.c.l.b16 %v499
        %v506 = vunpack.c.l.b16 %v500
        %v507 = vunpack.c.l.b16 %v501
        %v508 = vpack.c.b16 %v506, %v505
        %v509 = vpack.c.b16 %v507, %v507
        %v512 = vsel %vm455, %v509, 0
        %514 = vmatprep.subr.bf16.mxu0 0
        %515 = vmatpush1.bf16.msra.mxu0 %v508
        %516 = vmatprep.subr.bf16.mxu0 0
        %517 = vmatpush1.bf16.msra.mxu0 %v512
        %518 = vmatprep.subr.bf16.mxu0 0
        %519 = vmatpush1.bf16.msra.mxu0 0
        %520 = vmatprep.subr.bf16.mxu0 0
        %521 = vmatpush1.bf16.msra.mxu0 0
        %522 = vmatprep.subr.bf16.mxu0 0
        %523 = vmatpush1.bf16.msra.mxu0 0
        %524 = vmatprep.subr.bf16.mxu0 0
        %525 = vmatpush1.bf16.msra.mxu0 0
        %526 = vmatprep.subr.bf16.mxu0 0
        %527 = vmatpush1.bf16.msra.mxu0 0
        %528 = vmatprep.subr.bf16.mxu0 0
        %529 = vmatpush1.bf16.msra.mxu0 0
        %530 = vmatprep.subr.bf16.mxu0 0
        %531 = vmatpush1.bf16.msra.mxu0 0
        %532 = vmatprep.subr.bf16.mxu0 0
        %533 = vmatpush1.bf16.msra.mxu0 0
        %534 = vmatprep.subr.bf16.mxu0 0
        %535 = vmatpush1.bf16.msra.mxu0 0
        %536 = vmatprep.subr.bf16.mxu0 0
        %537 = vmatpush1.bf16.msra.mxu0 0
        %538 = vmatprep.subr.bf16.mxu0 0
        %539 = vmatpush1.bf16.msra.mxu0 0
        %540 = vmatprep.subr.bf16.mxu0 0
        %541 = vmatpush1.bf16.msra.mxu0 0
        %542 = vmatprep.subr.bf16.mxu0 0
        %543 = vmatpush1.bf16.msra.mxu0 0
        %544 = vmatprep.subr.bf16.mxu0 0
        %545 = vmatpush1.bf16.msra.mxu0 0
        %546 = vmatprep.mubr.bf16.mxu0 0
        %547 = vmatmul.mubr.bf16.gmra.mrb[0].mxu0 %v453
        %v548 = vpop.f32.mrb[0].mxu0
        %v549 = vadd.f32 0.0, %v548
        %v550 = vpop.f32.mrb[0].mxu0
        %v551 = vpop.f32.mrb[0].mxu0
        %v552 = vpop.f32.mrb[0].mxu0
        %553 = vdwg.mxu0
        %v554 = vpack.c.bf16 %v434, %v434
        %v555 = vpack.c.bf16 %v494, %v494
        %v556 = vpack.c.bf16 %v549, %v549
        %vm557 = vcmask 130048
        %v559 = vsel %vm557, %v554, 0
        %v562 = vsel %vm557, %v555, 0
        %564 = vmatprep.subr.bf16.mxu0 0
        %565 = vmatpush1.bf16.xpose.msra.mxu0 %v562
        %566 = vmatprep.subr.bf16.mxu0 0
        %567 = vmatpush1.bf16.xpose.msra.mxu0 0
        %568 = vmatprep.subr.bf16.mxu0 0
        %569 = vmatpush1.bf16.xpose.msra.mxu0 0
        %570 = vmatprep.subr.bf16.mxu0 0
        %571 = vmatpush1.bf16.xpose.msra.mxu0 0
        %572 = vmatprep.subr.bf16.mxu0 0
        %573 = vmatpush1.bf16.xpose.msra.mxu0 0
        %574 = vmatprep.subr.bf16.mxu0 0
        %575 = vmatpush1.bf16.xpose.msra.mxu0 0
        %576 = vmatprep.subr.bf16.mxu0 0
        %577 = vmatpush1.bf16.xpose.msra.mxu0 0
        %578 = vmatprep.subr.bf16.mxu0 0
        %579 = vmatpush1.bf16.xpose.msra.mxu0 0
        %580 = vmatprep.subr.bf16.mxu0 0
        %581 = vmatpush1.bf16.xpose.msra.mxu0 0
        %582 = vmatprep.subr.bf16.mxu0 0
        %583 = vmatpush1.bf16.xpose.msra.mxu0 0
        %584 = vmatprep.subr.bf16.mxu0 0
        %585 = vmatpush1.bf16.xpose.msra.mxu0 0
        %586 = vmatprep.subr.bf16.mxu0 0
        %587 = vmatpush1.bf16.xpose.msra.mxu0 0
        %588 = vmatprep.subr.bf16.mxu0 0
        %589 = vmatpush1.bf16.xpose.msra.mxu0 0
        %590 = vmatprep.subr.bf16.mxu0 0
        %591 = vmatpush1.bf16.xpose.msra.mxu0 0
        %592 = vmatprep.subr.bf16.mxu0 0
        %593 = vmatpush1.bf16.xpose.msra.mxu0 0
        %594 = vmatprep.subr.bf16.mxu0 0
        %595 = vmatpush1.bf16.xpose.msra.mxu0 0
        %596 = vmatprep.mubr.bf16.mxu0 0
        %597 = vmatmul.mubr.bf16.gmra.mrb[0].mxu0 %v559
        %v598 = vpop.f32.mrb[0].mxu0
        %v599 = vadd.f32 0.0, %v598
        %v600 = vpop.f32.mrb[0].mxu0
        %v601 = vpop.f32.mrb[0].mxu0
        %v602 = vpop.f32.mrb[0].mxu0
        %603 = vdwg.mxu0
        %vm604 = vcmask 64512
        %v605 = vsel %vm604, %v599, -inf
        %606 = vmax.xlane.f32.xlu0 %v605
        %v607 = vpop.xlane.xlu0 %606
        %v608 = vsub.f32 %v599, %v607
        %v609 = vmul.f32 %v608, 1.442695
        %v610 = vpow.pop %v609
        %v611 = vsel %vm604, %v610, 0.0
        %612 = vadd.xlane.f32.xlu0 %v611
        %v613 = vpop.xlane.xlu0 %612
        %v614 = vpack.c.bf16 %v610, %v610
        %v616 = vsel %vm604, %v614, 0
        %v619 = vsel %vm455, %v556, 0
        %621 = vmatprep.subr.bf16.mxu0 0
        %622 = vmatpush1.bf16.msra.mxu0 %v619
        %623 = vmatprep.subr.bf16.mxu0 0
        %624 = vmatpush1.bf16.msra.mxu0 0
        %625 = vmatprep.subr.bf16.mxu0 0
        %626 = vmatpush1.bf16.msra.mxu0 0
        %627 = vmatprep.subr.bf16.mxu0 0
        %628 = vmatpush1.bf16.msra.mxu0 0
        %629 = vmatprep.subr.bf16.mxu0 0
        %630 = vmatpush1.bf16.msra.mxu0 0
        %631 = vmatprep.subr.bf16.mxu0 0
        %632 = vmatpush1.bf16.msra.mxu0 0
        %633 = vmatprep.subr.bf16.mxu0 0
        %634 = vmatpush1.bf16.msra.mxu0 0
        %635 = vmatprep.subr.bf16.mxu0 0
        %636 = vmatpush1.bf16.msra.mxu0 0
        %637 = vmatprep.subr.bf16.mxu0 0
        %638 = vmatpush1.bf16.msra.mxu0 0
        %639 = vmatprep.subr.bf16.mxu0 0
        %640 = vmatpush1.bf16.msra.mxu0 0
        %641 = vmatprep.subr.bf16.mxu0 0
        %642 = vmatpush1.bf16.msra.mxu0 0
        %643 = vmatprep.subr.bf16.mxu0 0
        %644 = vmatpush1.bf16.msra.mxu0 0
        %645 = vmatprep.subr.bf16.mxu0 0
        %646 = vmatpush1.bf16.msra.mxu0 0
        %647 = vmatprep.subr.bf16.mxu0 0
        %648 = vmatpush1.bf16.msra.mxu0 0
        %649 = vmatprep.subr.bf16.mxu0 0
        %650 = vmatpush1.bf16.msra.mxu0 0
        %651 = vmatprep.subr.bf16.mxu0 0
        %652 = vmatpush1.bf16.msra.mxu0 0
        %653 = vmatprep.mubr.bf16.mxu0 0
        %654 = vmatmul.mubr.bf16.gmra.mrb[0].mxu0 %v616
        %v655 = vpop.f32.mrb[0].mxu0
        %v656 = vadd.f32 0.0, %v655
        %v657 = vpop.f32.mrb[0].mxu0
        %v658 = vpop.f32.mrb[0].mxu0
        %v659 = vpop.f32.mrb[0].mxu0
        %660 = vdwg.mxu0
        %v661 = vrcp.pop %v613
        %v662 = vmul.f32 %v656, %v661
        %663 = vst.msk [vmem:[#allocation2] sm:$0xff] %vm557, %v662
        %665 = vrot.lane.b32.xlu0 %v554, 112
        %v666 = vpop.permute.xlu0 %665
        %668 = vrot.lane.b32.xlu0 %v555, 112
        %v669 = vpop.permute.xlu0 %668
        %v671 = vsel %vm557, %v666, 0
        %v674 = vsel %vm557, %v669, 0
        %676 = vmatprep.subr.bf16.mxu0 0
        %677 = vmatpush1.bf16.xpose.msra.mxu0 %v674
        %678 = vmatprep.subr.bf16.mxu0 0
        %679 = vmatpush1.bf16.xpose.msra.mxu0 0
        %680 = vmatprep.subr.bf16.mxu0 0
        %681 = vmatpush1.bf16.xpose.msra.mxu0 0
        %682 = vmatprep.subr.bf16.mxu0 0
        %683 = vmatpush1.bf16.xpose.msra.mxu0 0
        %684 = vmatprep.subr.bf16.mxu0 0
        %685 = vmatpush1.bf16.xpose.msra.mxu0 0
        %686 = vmatprep.subr.bf16.mxu0 0
        %687 = vmatpush1.bf16.xpose.msra.mxu0 0
        %688 = vmatprep.subr.bf16.mxu0 0
        %689 = vmatpush1.bf16.xpose.msra.mxu0 0
        %690 = vmatprep.subr.bf16.mxu0 0
        %691 = vmatpush1.bf16.xpose.msra.mxu0 0
        %692 = vmatprep.subr.bf16.mxu0 0
        %693 = vmatpush1.bf16.xpose.msra.mxu0 0
        %694 = vmatprep.subr.bf16.mxu0 0
        %695 = vmatpush1.bf16.xpose.msra.mxu0 0
        %696 = vmatprep.subr.bf16.mxu0 0
        %697 = vmatpush1.bf16.xpose.msra.mxu0 0
        %698 = vmatprep.subr.bf16.mxu0 0
        %699 = vmatpush1.bf16.xpose.msra.mxu0 0
        %700 = vmatprep.subr.bf16.mxu0 0
        %701 = vmatpush1.bf16.xpose.msra.mxu0 0
        %702 = vmatprep.subr.bf16.mxu0 0
        %703 = vmatpush1.bf16.xpose.msra.mxu0 0
        %704 = vmatprep.subr.bf16.mxu0 0
        %705 = vmatpush1.bf16.xpose.msra.mxu0 0
        %706 = vmatprep.subr.bf16.mxu0 0
        %707 = vmatpush1.bf16.xpose.msra.mxu0 0
        %708 = vmatprep.mubr.bf16.mxu0 0
        %709 = vmatmul.mubr.bf16.gmra.mrb[0].mxu0 %v671
        %v710 = vpop.f32.mrb[0].mxu0
        %v711 = vadd.f32 0.0, %v710
        %v712 = vpop.f32.mrb[0].mxu0
        %v713 = vpop.f32.mrb[0].mxu0
        %v714 = vpop.f32.mrb[0].mxu0
        %715 = vdwg.mxu0
        %v716 = vsel %vm604, %v711, -inf
        %717 = vmax.xlane.f32.xlu0 %v716
        %v718 = vpop.xlane.xlu0 %717
        %v719 = vsub.f32 %v711, %v718
        %v720 = vmul.f32 %v719, 1.442695
        %v721 = vpow.pop %v720
        %v722 = vsel %vm604, %v721, 0.0
        %723 = vadd.xlane.f32.xlu0 %v722
        %v724 = vpop.xlane.xlu0 %723
        %v725 = vpack.c.bf16 %v721, %v721
        %727 = vrot.lane.b32.xlu0 %v556, 112
        %v728 = vpop.permute.xlu0 %727
        %v730 = vsel %vm604, %v725, 0
        %v733 = vsel %vm455, %v728, 0
        %735 = vmatprep.subr.bf16.mxu0 0
        %736 = vmatpush1.bf16.msra.mxu0 %v733
        %737 = vmatprep.subr.bf16.mxu0 0
        %738 = vmatpush1.bf16.msra.mxu0 0
        %739 = vmatprep.subr.bf16.mxu0 0
        %740 = vmatpush1.bf16.msra.mxu0 0
        %741 = vmatprep.subr.bf16.mxu0 0
        %742 = vmatpush1.bf16.msra.mxu0 0
        %743 = vmatprep.subr.bf16.mxu0 0
        %744 = vmatpush1.bf16.msra.mxu0 0
        %745 = vmatprep.subr.bf16.mxu0 0
        %746 = vmatpush1.bf16.msra.mxu0 0
        %747 = vmatprep.subr.bf16.mxu0 0
        %748 = vmatpush1.bf16.msra.mxu0 0
        %749 = vmatprep.subr.bf16.mxu0 0
        %750 = vmatpush1.bf16.msra.mxu0 0
        %751 = vmatprep.subr.bf16.mxu0 0
        %752 = vmatpush1.bf16.msra.mxu0 0
        %753 = vmatprep.subr.bf16.mxu0 0
        %754 = vmatpush1.bf16.msra.mxu0 0
        %755 = vmatprep.subr.bf16.mxu0 0
        %756 = vmatpush1.bf16.msra.mxu0 0
        %757 = vmatprep.subr.bf16.mxu0 0
        %758 = vmatpush1.bf16.msra.mxu0 0
        %759 = vmatprep.subr.bf16.mxu0 0
        %760 = vmatpush1.bf16.msra.mxu0 0
        %761 = vmatprep.subr.bf16.mxu0 0
        %762 = vmatpush1.bf16.msra.mxu0 0
        %763 = vmatprep.subr.bf16.mxu0 0
        %764 = vmatpush1.bf16.msra.mxu0 0
        %765 = vmatprep.subr.bf16.mxu0 0
        %766 = vmatpush1.bf16.msra.mxu0 0
        %767 = vmatprep.mubr.bf16.mxu0 0
        %768 = vmatmul.mubr.bf16.gmra.mrb[0].mxu0 %v730
        %v769 = vpop.f32.mrb[0].mxu0
        %v770 = vadd.f32 0.0, %v769
        %v771 = vpop.f32.mrb[0].mxu0
        %v772 = vpop.f32.mrb[0].mxu0
        %v773 = vpop.f32.mrb[0].mxu0
        %774 = vdwg.mxu0
        %v775 = vrcp.pop %v724
        %v776 = vmul.f32 %v770, %v775
        %778 = vrot.lane.b32.xlu0 %v776, 16
        %v779 = vpop.permute.xlu0 %778
        %vm781 = vcmask 261248
        %782 = vst.msk [vmem:[#allocation2] sm:$0xff] %vm781, %v779
        %v783 = vld [vmem:[#allocation2] sm:$0xff]
        %v784 = vpack.c.bf16 %v783, %v783
        %v785 = vld [vmem:[%s5] sm:$0xf]
        %v786 = vld [vmem:[%s5 + $0x4] sm:$0xf]
        %v787 = vld [vmem:[%s5 + $0x8] sm:$0xf]
        %v788 = vld [vmem:[%s5 + $0xc] sm:$0xf]
        %v789 = vld [vmem:[%s6] sm:$0x1]
        %v791 = vlaneseq
        %v792 = vshrl.u32 %v791, 7
        %v793 = vsub.s32 0, %v792
        %v794 = vrot.slane %v789, %v793
        %v800 = vunpack.c.l.b16 %v785
        %v801 = vunpack.c.l.b16 %v786
        %v802 = vunpack.c.l.b16 %v787
        %v803 = vunpack.c.l.b16 %v788
        %v804 = vpack.c.b16 %v801, %v800
        %v805 = vpack.c.b16 %v803, %v802
        %v809 = vsel %vm395, %v784, 0
        %811 = vmatprep.subr.bf16.mxu0 0
        %812 = vmatpush1.bf16.msra.mxu0 %v804
        %813 = vmatprep.subr.bf16.mxu0 0
        %814 = vmatpush1.bf16.msra.mxu0 %v805
        %815 = vmatprep.subr.bf16.mxu0 0
        %816 = vmatpush1.bf16.msra.mxu0 0
        %817 = vmatprep.subr.bf16.mxu0 0
        %818 = vmatpush1.bf16.msra.mxu0 0
        %819 = vmatprep.subr.bf16.mxu0 0
        %820 = vmatpush1.bf16.msra.mxu0 0
        %821 = vmatprep.subr.bf16.mxu0 0
        %822 = vmatpush1.bf16.msra.mxu0 0
        %823 = vmatprep.subr.bf16.mxu0 0
        %824 = vmatpush1.bf16.msra.mxu0 0
        %825 = vmatprep.subr.bf16.mxu0 0
        %826 = vmatpush1.bf16.msra.mxu0 0
        %827 = vmatprep.subr.bf16.mxu0 0
        %828 = vmatpush1.bf16.msra.mxu0 0
        %829 = vmatprep.subr.bf16.mxu0 0
        %830 = vmatpush1.bf16.msra.mxu0 0
        %831 = vmatprep.subr.bf16.mxu0 0
        %832 = vmatpush1.bf16.msra.mxu0 0
        %833 = vmatprep.subr.bf16.mxu0 0
        %834 = vmatpush1.bf16.msra.mxu0 0
        %835 = vmatprep.subr.bf16.mxu0 0
        %836 = vmatpush1.bf16.msra.mxu0 0
        %837 = vmatprep.subr.bf16.mxu0 0
        %838 = vmatpush1.bf16.msra.mxu0 0
        %839 = vmatprep.subr.bf16.mxu0 0
        %840 = vmatpush1.bf16.msra.mxu0 0
        %841 = vmatprep.subr.bf16.mxu0 0
        %842 = vmatpush1.bf16.msra.mxu0 0
        %843 = vmatprep.mubr.bf16.mxu0 0
        %844 = vmatmul.mubr.bf16.gmra.mrb[0].mxu0 %v809
        %v845 = vpop.f32.mrb[0].mxu0
        %v846 = vadd.f32 %v794, %v845
        %v847 = vpop.f32.mrb[0].mxu0
        %v848 = vpop.f32.mrb[0].mxu0
        %v849 = vpop.f32.mrb[0].mxu0
        %850 = vdwg.mxu0
        %851 = vst.msk [vmem:[%s373] sm:$0xff] %vm395, %v846
        %s852 = sand.u32 %s193, 1
        %s853 = scalar_lea.sflag [#allocation5], %s852
        %s854 = sand.u32 %s193, 1
        %s855 = smul.addr %s854, 8
        %s856 = scalar_lea.vmem [#allocation12], %s855
        // Predicated region
        $region69: #{tpu_custom_call.1} parent=47 // pred_check
          %p857 = pneg %p203
        $region70: #{tpu_custom_call.1} parent=47 // pred_check_branch
          %859 = sbr.rel (%p857) target = $region72
        $region71: #{tpu_custom_call.1} parent=47 // pred_region
          %s861 = ssub.s32 128, 128
          %862 = vsyncadd %s853, %s861
          %s863 = smul.addr %s28, 128
          %s864 = scalar_lea.hbm %s7, %s863
          %s866 = sshll.u32 %s856, 4
          %s867 = int_to_ptr.vmem [resolvable:$true] %s866
          %869 = dma.vmem_to_hbm [thread:$0]  %s867, 128, %s864, %s853
        $region72: #{tpu_custom_call.1} parent=47 // pred_fallthru
          _
      $region48: #{tpu_custom_call.1} parent=5 // pred_fallthru
        _
      %p870 = scmp.le.s32.totalorder 2, %s23
      // Predicated region
      $region73: #{tpu_custom_call.1} parent=5 // pred_check
        %p871 = pneg %p870
      $region74: #{tpu_custom_call.1} parent=5 // pred_check_branch
        %873 = sbr.rel (%p871) target = $region76
      $region75: #{tpu_custom_call.1} parent=5 // pred_region
        %s874 = ssub.s32 %s23, 2
        // Predicated region
        $region77: #{tpu_custom_call.1} parent=75 // pred_check
          %p875 = pneg %p209
        $region78: #{tpu_custom_call.1} parent=75 // pred_check_branch
          %877 = sbr.rel (%p875) target = $region80
        $region79: #{tpu_custom_call.1} parent=75 // pred_region
          %s878 = sand.u32 %s194, 1
          %s879 = scalar_lea.sflag [#allocation5], %s878
          %s880 = sand.u32 %s194, 1
          %s881 = smul.addr %s880, 8
          %s882 = scalar_lea.vmem [#allocation12], %s881
          %883 = dma.done %s879, 128
        $region80: #{tpu_custom_call.1} parent=75 // pred_fallthru
          _
      $region76: #{tpu_custom_call.1} parent=5 // pred_fallthru
        _
    $region6: #{tpu_custom_call.1} parent=1 // loop_footer
      %s27 = sadd.s32 1, %s23
    $region7: #{tpu_custom_call.1} parent=1 // loop_footer_branch
      %22 = sbr.rel target = $region3
    $region8: #{tpu_custom_call.1} parent=1 // loop_exit
      _
    %884 = vsyncpa [#allocation4], 1
    %s885 = scalar_lea.sflag [#allocation4], 1
    %886 = vsyncpa %s885, 1
    %887 = vsyncpa [#allocation7], 1
    %s888 = scalar_lea.sflag [#allocation7], 1
    %889 = vsyncpa %s888, 1
    %890 = vsyncpa [#allocation10], 1
    %891 = vsyncpa [#allocation5], 1
    %s892 = scalar_lea.sflag [#allocation5], 1
    %893 = vsyncpa %s892, 1

</llo_original>
